<compile_context>
chip_gen: v7x
topology: tpu7x:2x2x1
jax: 0.10.0
libtpu: 0.0.40
codegen_flags: <defaults>
</compile_context>

<pallas_src>
import jax
import jax.numpy as jnp
from jax.experimental import pallas as pl
from jax.experimental.pallas import tpu as pltpu


# ----------------------------------------------------------------------------
# Kernel: identity copy through VMEM (the compute content of BaseModel.forward
# is "none"; subclasses replace this body with real compute).
# ----------------------------------------------------------------------------
def _copy_kernel(x_ref, o_ref):
    o_ref[...] = x_ref[...]


def _ceil_to(x: int, m: int) -> int:
    return -(-x // m) * m


def _vmem_capacity_bytes() -> int:
    """Trace-time VMEM capacity query with a conservative (v7x) fallback."""
    try:
        info = pltpu.get_tpu_info()
        return int(getattr(info, "vmem_capacity_bytes", 64 << 20))
    except Exception:
        return 64 << 20


def base_model_forward_pallas(x: jax.Array) -> jax.Array:
    """Tiled Pallas identity pass (demo scaffold for subclass forwards).

    Flattens the input to a lane-dense (rows, C) slab (C a wide multiple of
    128), copies it through VMEM in per-generation-sized blocks, and reshapes
    back.  Padding, when needed at all, is limited to < C extra elements; the
    ragged boundary block is handled by the Pallas grid (pl.cdiv) itself.
    """
    orig_shape = x.shape
    dtype = x.dtype
    n = x.size
    if n == 0:
        return x

    dname = jnp.dtype(dtype).name
    if dname in ("int4", "uint4") or dname.startswith("float4"):
        # TODO(synk): packed 4-bit sublane tiling not handled by this scaffold.
        return x

    itemsize = jnp.dtype(dtype).itemsize
    # Sub-32-bit dtypes pack along sublanes: minimum row-tile granularity.
    sub_min = {4: 8, 2: 16, 1: 32}.get(itemsize, 8)
    total_bytes = n * itemsize

    # --- Per-generation block / VMEM sizing -------------------------------
    vmem_cap = _vmem_capacity_bytes()
    if vmem_cap <= (64 << 20):        # v7x: 64 MiB VMEM per TC, 3.2 TB/s HBM
        max_block_bytes = 8 << 20     # 4 x 8 MiB (dbl-buffered in+out) = 32 MiB
        vmem_limit = 40 << 20
    else:                             # v5e / v6e: 128 MiB VMEM
        max_block_bytes = 16 << 20    # 4 x 16 MiB = 64 MiB
        vmem_limit = 72 << 20

    # --- Lane width: widest multiple of 128 dividing n (pad-free common case)
    lane_cands = (8192, 4096, 2048, 1024, 512, 256, 128)
    C = next((c for c in lane_cands if n % c == 0), 128)

    padded_n = _ceil_to(n, C)         # at most C-1 (=127) extra elements
    rows = padded_n // C

    # --- Row tile ----------------------------------------------------------
    max_rows = max(sub_min, (max_block_bytes // (C * itemsize)) // sub_min * sub_min)
    if rows <= sub_min:
        tile_rows = rows              # single full-extent block (always legal)
    elif rows <= max_rows and total_bytes < (2 << 20):
        tile_rows = rows              # small tensor: one block, no split overhead
    else:
        # Multi-block: sublane-aligned tile, capped so the grid has >= 2 steps
        # (lets v7x shard the "parallel" axis across its two TensorCores).
        target = min(max_rows, _ceil_to(-(-rows // 2), sub_min))
        tile_rows = max(sub_min, target)

    grid = (pl.cdiv(rows, tile_rows),)   # boundary block masked by Pallas

    flat = x.reshape(-1)
    pad = padded_n - n
    if pad:
        flat = jnp.pad(flat, (0, pad))   # minimal tail pad only (< 128 elems)
    slab = flat.reshape(rows, C)

    out = pl.pallas_call(
        _copy_kernel,
        out_shape=jax.ShapeDtypeStruct((rows, C), dtype),
        grid_spec=pltpu.PrefetchScalarGridSpec(
            num_scalar_prefetch=0,
            grid=grid,
            in_specs=[pl.BlockSpec((tile_rows, C), lambda i: (i, 0))],
            out_specs=pl.BlockSpec((tile_rows, C), lambda i: (i, 0)),
        ),
        # Pure identity: let the output reuse the input's HBM buffer.
        input_output_aliases={0: 0},
        compiler_params=pltpu.CompilerParams(
            dimension_semantics=("parallel",),   # shards across v7x's 2 TCs
            vmem_limit_bytes=vmem_limit,
        ),
        cost_estimate=pl.CostEstimate(
            flops=0,
            transcendentals=0,
            bytes_accessed=2 * padded_n * itemsize,
        ),
    )(slab)

    out_flat = out.reshape(-1)
    if pad:
        out_flat = out_flat[:n]
    return out_flat.reshape(orig_shape)


# ----------------------------------------------------------------------------
# JAX-side analogue of BaseModel: holds a config dict; the *base* class forward
# has no parameters and no compute.
# ----------------------------------------------------------------------------
class BaseModelJAX:
    def __init__(self, config, *, run_pallas_identity=False, **kwargs):
        self.config = config
        self.run_pallas_identity = run_pallas_identity

    def forward(self, x):
        # The true PyTorch BaseModel.forward raises NotImplementedError and
        # does no compute; short-circuit (free) unless the Pallas demo path is
        # explicitly requested.  Subclasses replace this with real kernels.
        if not self.run_pallas_identity:
            return x
        return base_model_forward_pallas(x)

    __call__ = forward


if __name__ == "__main__":
    key = jax.random.PRNGKey(0)
    model = BaseModelJAX(config={"checkpoint_activations": False},
                         run_pallas_identity=True)

    # Primary NCHW example input: batch=2, channels=4, spatial=16x16 (f32,
    # element count divisible by 2048 -> pad-free single lane-dense block).
    x = jax.random.normal(key, (2, 4, 16, 16), dtype=jnp.float32)
    y = jax.block_until_ready(model(x))
    assert y.shape == x.shape and y.dtype == x.dtype
    assert bool(jnp.array_equal(y, x)), "identity forward mismatch (f32)"

    k1, k2, k3 = jax.random.split(key, 3)

    # Ragged element count -> minimal (<128-element) tail-pad path.
    xr = jax.random.normal(k1, (3, 5, 7), dtype=jnp.float32)
    yr = jax.block_until_ready(model(xr))
    assert yr.shape == xr.shape and bool(jnp.array_equal(yr, xr)), "ragged mismatch"

    # bf16 exercises the packed-sublane (16-row minimum) tiling path.
    xb = jax.random.normal(k2, (2, 4, 16, 16), dtype=jnp.bfloat16)
    yb = jax.block_until_ready(model(xb))
    assert yb.dtype == jnp.bfloat16 and bool(jnp.array_equal(yb, xb)), "bf16 mismatch"

    # Multi-block path: >=2 grid steps (TC sharding) with a masked boundary block.
    xm = jax.random.normal(k3, (72, 8192), dtype=jnp.float32)
    ym = jax.block_until_ready(model(xm))
    assert ym.shape == xm.shape and bool(jnp.array_equal(ym, xm)), "multi-block mismatch"

    # Default base-class forward short-circuits: no kernel launch, no copy.
    base = BaseModelJAX(config={"checkpoint_activations": False})
    assert base(x) is x

    print("KERNEL_OK")
</pallas_src>

<mosaic_0001>
module attributes {stable_mosaic.version = 11 : i64} {
  func.func @_copy_kernel(%arg0: i32, %arg1: memref<1x2048xf32, #tpu.memory_space<vmem>>, %arg2: memref<1x2048xf32, #tpu.memory_space<vmem>>) attributes {dimension_semantics = [#tpu.dimension_semantics<parallel>], iteration_bounds = array<i64: 1>, scalar_prefetch = 0 : i64, scratch_operands = 0 : i64, tpu.core_type = #tpu.core_type<tc>, window_params = [{transform_indices = @transform_0, window_bounds = array<i64: 1, 2048>}, {transform_indices = @transform_1, window_bounds = array<i64: 1, 2048>}]} {
    %c0 = arith.constant 0 : index
    %c0_0 = arith.constant 0 : index
    %0 = vector.load %arg1[%c0, %c0_0] : memref<1x2048xf32, #tpu.memory_space<vmem>>, vector<1x2048xf32>
    %c0_1 = arith.constant 0 : index
    %c0_2 = arith.constant 0 : index
    %1 = vector.load %arg2[%c0_1, %c0_2] : memref<1x2048xf32, #tpu.memory_space<vmem>>, vector<1x2048xf32>
    tpu.vector_store %arg2[%c0_1, %c0_2], %0 {strides = array<i32>} : memref<1x2048xf32, #tpu.memory_space<vmem>>, vector<1x2048xf32>,
    return
  }
  func.func @transform_0(%arg0: i32) -> (i32, i32) {
    %c0_i32 = arith.constant 0 : i32
    %c0_i32_0 = arith.constant 0 : i32
    return %arg0, %c0_i32 : i32, i32
  }
  func.func @transform_1(%arg0: i32) -> (i32, i32) {
    %c0_i32 = arith.constant 0 : i32
    %c0_i32_0 = arith.constant 0 : i32
    return %arg0, %c0_i32 : i32, i32
  }
}

</mosaic_0001>

<llo_original>
// kernel: tpu_custom_call.1
$region0: #{tpu_custom_call.1}
  #allocation0 [shape = 'u32[]', space=smem, size = 0x4, offset = 0x4, fixed_abs, tag = 'smem constant byte address 0x4 - core index']
  #allocation1 [shape = 'u32[144,128]{1,0:T(1,128)}', space=vmem, size = 0x12000, scoped, tag = 'internal scratch']
  %s0 = inlined_call_operand.hbm [shape: f32[1,2048], index: 0, kind: input, shape index: {}, may-alias: {0,1}]
  %s1 = inlined_call_operand.hbm [shape: f32[1,2048], index: 1, kind: output, shape index: {}, may-alias: {0,1}]
  %s2 = sld [smem:[#allocation0]]
  $region18: #{tpu_custom_call.1} parent=0
    _
  %s4 = ssub.s32 1, %s2
  %s5 = scalar_select 0, %s4, %s2
  $region1: #{tpu_custom_call.1} parent=0
    #allocation2 [shape = 'u8[8192]{0}', space=vmem, size = 0x2000, scoped, tag = 'input window, operand 0, single buffered']
    #allocation3 [shape = 's32[1]{0}', space=sflag, size = 0x4, scoped, tag = 'scoped memory for tpu_custom_call.1']
    #allocation4 [shape = 's32[1]{0}', space=sflag, size = 0x4, scoped, tag = 'scoped memory for tpu_custom_call.1']
    #allocation5 [shape = 'u8[8192]{0}', space=vmem, size = 0x2000, scoped, tag = 'output window, operand 0, single buffered']
    %6 = vsyncpa [#allocation3], 0
    %7 = vsyncpa [#allocation4], 0
    // Predicated region
    $region2: #{tpu_custom_call.1} parent=1 // pred_check
      _
    $region3: #{tpu_custom_call.1} parent=1 // pred_check_branch
      %9 = sbr.rel (0) target = $region5
    $region4: #{tpu_custom_call.1} parent=1 // pred_region
      %s11 = ssub.s32 256, 256
      %12 = vsyncadd [#allocation3], %s11
      %s14 = sshll.u32 [#allocation2], 4
      %s15 = int_to_ptr.vmem [resolvable:$true] %s14
      %17 = dma.hbm_to_vmem [thread:$0]  %s0, 256, %s15, [#allocation3]
    $region5: #{tpu_custom_call.1} parent=1 // pred_fallthru
      _
    // Predicated region
    $region6: #{tpu_custom_call.1} parent=1 // pred_check
      _
    $region7: #{tpu_custom_call.1} parent=1 // pred_check_branch
      %19 = sbr.rel (0) target = $region9
    $region8: #{tpu_custom_call.1} parent=1 // pred_region
      %20 = dma.done [#allocation3], 256
    $region9: #{tpu_custom_call.1} parent=1 // pred_fallthru
      _
    %v21 = vld [vmem:[#allocation2] sm:$0xff]
    %v22 = vld [vmem:[#allocation2 + $0x8] sm:$0xff]
    %23 = vst [vmem:[#allocation5] sm:$0xff] %v21
    %24 = vst [vmem:[#allocation5 + $0x8] sm:$0xff] %v22
    // Predicated region
    $region10: #{tpu_custom_call.1} parent=1 // pred_check
      _
    $region11: #{tpu_custom_call.1} parent=1 // pred_check_branch
      %26 = sbr.rel (0) target = $region13
    $region12: #{tpu_custom_call.1} parent=1 // pred_region
      %s28 = ssub.s32 256, 256
      %29 = vsyncadd [#allocation4], %s28
      %s31 = sshll.u32 [#allocation5], 4
      %s32 = int_to_ptr.vmem [resolvable:$true] %s31
      %34 = dma.vmem_to_hbm [thread:$0]  %s32, 256, %s1, [#allocation4]
    $region13: #{tpu_custom_call.1} parent=1 // pred_fallthru
      _
    // Predicated region
    $region14: #{tpu_custom_call.1} parent=1 // pred_check
      _
    $region15: #{tpu_custom_call.1} parent=1 // pred_check_branch
      %36 = sbr.rel (0) target = $region17
    $region16: #{tpu_custom_call.1} parent=1 // pred_region
      %37 = dma.done [#allocation4], 256
    $region17: #{tpu_custom_call.1} parent=1 // pred_fallthru
      _
    %38 = vsyncpa [#allocation3], 1
    %39 = vsyncpa [#allocation4], 1

</llo_original>
